<compile_context>
chip_gen: v6e
topology: v6e:2x2x1
jax: 0.10.0
libtpu: 0.0.40
codegen_flags: <defaults>
</compile_context>

<pallas_src>
import functools

import jax
import jax.numpy as jnp
from jax.experimental import pallas as pl
from jax.experimental.pallas import tpu as pltpu

INPUT_SIZE = 10
HIDDEN_SIZE = 20
OUTPUT_SIZE = 1


def _mlp_kernel(xt_ref, w1_ref, b1_ref, w2t_ref, b2_ref, o_ref):
    # fc1 on the MXU: (HIDDEN, INPUT) @ (INPUT, blk) -> (HIDDEN, blk).
    # bf16 operands, f32 accumulation; the batch lives on the lane axis.
    h = jnp.dot(w1_ref[...], xt_ref[...], preferred_element_type=jnp.float32)
    h = h + b1_ref[...]                           # (HIDDEN, 1) broadcast over lanes
    # Sigmoid: exp on the EUP, approximate reciprocal also on the EUP.
    h = pl.reciprocal(1.0 + jnp.exp(-h), approx=True)
    # fc2 on the VPU: 20 lane-dense multiplies + a sublane (XLU) reduction.
    y = jnp.sum(h * w2t_ref[...], axis=0, keepdims=True)   # (1, blk)
    y = y + b2_ref[...]
    o_ref[...] = jnp.maximum(y, 0.0).astype(o_ref.dtype)   # ReLU


def _round_up(n, m):
    return ((n + m - 1) // m) * m


def example_nn_forward(x, w1, b1, w2, b2, *, block_rows=32768):
    """x: (B, INPUT_SIZE) f32.  w1: (HIDDEN, INPUT) (PyTorch layout), b1: (HIDDEN,),
    w2: (OUTPUT, HIDDEN), b2: (OUTPUT,).  Returns (B, OUTPUT_SIZE) f32."""
    B = x.shape[0]

    # Batch-tile selection:
    #   * multiple of 128 so batch-on-lanes tiles are full, unmasked vregs,
    #   * capped at half the 128-aligned batch so the "parallel" grid has at
    #     least 2 steps (keeps both v7x TensorCores busy),
    #   * large default (32k rows) to amortize the ~0.35us per-grid-step cost.
    if B <= 128:
        blk = B                                   # single full-extent block
    else:
        b128 = _round_up(B, 128)
        half = _round_up(pl.cdiv(b128, 2), 128)
        blk = min(_round_up(block_rows, 128), half)
    grid = (pl.cdiv(B, blk),)

    # Wrapper-side layout plumbing (fuses under jit): feature-major bf16
    # streaming of x / w1; column-vector biases; w2 as a (HIDDEN, 1) column.
    xt = x.T.astype(jnp.bfloat16)                 # (INPUT, B): lane-dense batch
    w1b = w1.astype(jnp.bfloat16)                 # (HIDDEN, INPUT)
    b1c = b1.reshape(HIDDEN_SIZE, 1).astype(jnp.float32)
    w2t = w2.reshape(OUTPUT_SIZE, HIDDEN_SIZE).T.astype(jnp.float32)   # (HIDDEN, 1)
    b2c = b2.reshape(OUTPUT_SIZE, 1).astype(jnp.float32)

    y_t = pl.pallas_call(
        _mlp_kernel,
        out_shape=jax.ShapeDtypeStruct((OUTPUT_SIZE, B), jnp.float32),
        grid=grid,
        in_specs=[
            pl.BlockSpec((INPUT_SIZE, blk), lambda i: (0, i)),           # x^T tile
            pl.BlockSpec((HIDDEN_SIZE, INPUT_SIZE), lambda i: (0, 0)),   # w1 (resident)
            pl.BlockSpec((HIDDEN_SIZE, 1), lambda i: (0, 0)),            # b1 (resident)
            pl.BlockSpec((HIDDEN_SIZE, 1), lambda i: (0, 0)),            # w2^T (resident)
            pl.BlockSpec((OUTPUT_SIZE, 1), lambda i: (0, 0)),            # b2 (resident)
        ],
        out_specs=pl.BlockSpec((OUTPUT_SIZE, blk), lambda i: (0, i)),
        compiler_params=pltpu.CompilerParams(
            dimension_semantics=("parallel",),
            vmem_limit_bytes=48 * 1024 * 1024),
    )(xt, w1b, b1c, w2t, b2c)

    # (1, B) -> (B, 1): OUTPUT_SIZE == 1, so this is a free row-major reshape.
    return y_t.reshape(B, OUTPUT_SIZE)


def _init_linear(key, out_features, in_features):
    # torch.nn.Linear default init: U(-1/sqrt(in), 1/sqrt(in)) for W and b.
    kw, kb = jax.random.split(key)
    bound = 1.0 / jnp.sqrt(jnp.float32(in_features))
    w = jax.random.uniform(kw, (out_features, in_features), jnp.float32, -bound, bound)
    b = jax.random.uniform(kb, (out_features,), jnp.float32, -bound, bound)
    return w, b


if __name__ == "__main__":
    key = jax.random.PRNGKey(0)
    k_x, k_fc1, k_fc2 = jax.random.split(key, 3)

    batch = 200   # not 128-aligned: exercises the ragged last tile + 2-step grid
    x = jax.random.normal(k_x, (batch, INPUT_SIZE), jnp.float32)
    w1, b1 = _init_linear(k_fc1, HIDDEN_SIZE, INPUT_SIZE)
    w2, b2 = _init_linear(k_fc2, OUTPUT_SIZE, HIDDEN_SIZE)

    # Small tile for the demo so grid=(2,) (both TensorCores exercised on v7x).
    fwd = jax.jit(functools.partial(example_nn_forward, block_rows=128))
    out = fwd(x, w1, b1, w2, b2)
    jax.block_until_ready(out)

    # Pure-JAX f32 reference of the module semantics.  Tolerance covers bf16
    # streaming of x / w1 (the MXU truncates f32 to bf16 at default precision
    # anyway) and the approximate EUP reciprocal in the sigmoid.
    h_ref = jax.nn.sigmoid(x @ w1.T + b1)
    y_ref = jnp.maximum(h_ref @ w2.T + b2, 0.0)
    assert out.shape == (batch, OUTPUT_SIZE)
    max_err = float(jnp.max(jnp.abs(out - y_ref)))
    assert jnp.allclose(out, y_ref, atol=3e-2, rtol=3e-2), max_err

    print("KERNEL_OK")
</pallas_src>

<mosaic_0001>
module attributes {stable_mosaic.version = 11 : i64} {
  func.func @_mlp_kernel(%arg0: i32, %arg1: memref<10x128xbf16, #tpu.memory_space<vmem>>, %arg2: memref<20x10xbf16, #tpu.memory_space<vmem>>, %arg3: memref<20x1xf32, #tpu.memory_space<vmem>>, %arg4: memref<20x1xf32, #tpu.memory_space<vmem>>, %arg5: memref<1x1xf32, #tpu.memory_space<vmem>>, %arg6: memref<1x128xf32, #tpu.memory_space<vmem>>) attributes {dimension_semantics = [#tpu.dimension_semantics<parallel>], iteration_bounds = array<i64: 2>, scalar_prefetch = 0 : i64, scratch_operands = 0 : i64, tpu.core_type = #tpu.core_type<tc>, window_params = [{transform_indices = @transform_0, window_bounds = array<i64: 10, 128>}, {pipeline_mode = #tpu.pipeline_mode<synchronous>, transform_indices = @transform_1, window_bounds = array<i64: 20, 10>}, {pipeline_mode = #tpu.pipeline_mode<synchronous>, transform_indices = @transform_2, window_bounds = array<i64: 20, 1>}, {pipeline_mode = #tpu.pipeline_mode<synchronous>, transform_indices = @transform_3, window_bounds = array<i64: 20, 1>}, {pipeline_mode = #tpu.pipeline_mode<synchronous>, transform_indices = @transform_4, window_bounds = array<i64: 1, 1>}, {transform_indices = @transform_5, window_bounds = array<i64: 1, 128>}]} {
    %c0 = arith.constant 0 : index
    %c0_0 = arith.constant 0 : index
    %0 = vector.load %arg2[%c0, %c0_0] : memref<20x10xbf16, #tpu.memory_space<vmem>>, vector<20x10xbf16>
    %c0_1 = arith.constant 0 : index
    %c0_2 = arith.constant 0 : index
    %1 = vector.load %arg1[%c0_1, %c0_2] : memref<10x128xbf16, #tpu.memory_space<vmem>>, vector<10x128xbf16>
    %cst = arith.constant dense<0.000000e+00> : vector<20x128xf32>
    %2 = tpu.matmul %0, %1, %cst {dimension_numbers = #tpu.dot_dimension_numbers<[1], [0], [0], [1], [0, 0, 1, 1], [], []>} : vector<20x10xbf16>, vector<10x128xbf16>, vector<20x128xf32> -> vector<20x128xf32>
    %c0_3 = arith.constant 0 : index
    %c0_4 = arith.constant 0 : index
    %3 = vector.load %arg3[%c0_3, %c0_4] : memref<20x1xf32, #tpu.memory_space<vmem>>, vector<20x1xf32>
    %4 = vector.broadcast %3 : vector<20x1xf32> to vector<20x128xf32>
    %5 = arith.addf %2, %4 : vector<20x128xf32>
    %cst_5 = arith.constant 0.000000e+00 : f32
    %6 = vector.broadcast %cst_5 : f32 to vector<20x128xf32>
    %7 = arith.subf %6, %5 : vector<20x128xf32>
    %8 = math.exp %7 : vector<20x128xf32>
    %cst_6 = arith.constant 1.000000e+00 : f32
    %9 = vector.broadcast %cst_6 : f32 to vector<20x128xf32>
    %10 = arith.addf %9, %8 : vector<20x128xf32>
    %11 = tpu.reciprocal %10 {approx = true} : vector<20x128xf32> -> vector<20x128xf32>
    %c0_7 = arith.constant 0 : index
    %c0_8 = arith.constant 0 : index
    %12 = vector.load %arg4[%c0_7, %c0_8] : memref<20x1xf32, #tpu.memory_space<vmem>>, vector<20x1xf32>
    %13 = vector.broadcast %12 : vector<20x1xf32> to vector<20x128xf32>
    %14 = arith.mulf %11, %13 : vector<20x128xf32>
    %cst_9 = arith.constant dense<0.000000e+00> : vector<128xf32>
    %15 = vector.multi_reduction <add>, %14, %cst_9 [0] : vector<20x128xf32> to vector<128xf32>
    %16 = vector.shape_cast %15 : vector<128xf32> to vector<1x128xf32>
    %c0_10 = arith.constant 0 : index
    %c0_11 = arith.constant 0 : index
    %17 = vector.load %arg5[%c0_10, %c0_11] : memref<1x1xf32, #tpu.memory_space<vmem>>, vector<1x1xf32>
    %18 = vector.broadcast %17 : vector<1x1xf32> to vector<1x128xf32>
    %19 = arith.addf %16, %18 : vector<1x128xf32>
    %cst_12 = arith.constant 0.000000e+00 : f32
    %20 = vector.broadcast %cst_12 : f32 to vector<1x128xf32>
    %21 = arith.maximumf %19, %20 : vector<1x128xf32>
    %c0_13 = arith.constant 0 : index
    %c0_14 = arith.constant 0 : index
    %22 = vector.load %arg6[%c0_13, %c0_14] : memref<1x128xf32, #tpu.memory_space<vmem>>, vector<1x128xf32>
    tpu.vector_store %arg6[%c0_13, %c0_14], %21 {strides = array<i32>} : memref<1x128xf32, #tpu.memory_space<vmem>>, vector<1x128xf32>,
    return
  }
  func.func @transform_0(%arg0: i32) -> (i32, i32) {
    %c0_i32 = arith.constant 0 : i32
    %c0_i32_0 = arith.constant 0 : i32
    return %c0_i32, %arg0 : i32, i32
  }
  func.func @transform_1(%arg0: i32) -> (i32, i32) {
    %c0_i32 = arith.constant 0 : i32
    %c0_i32_0 = arith.constant 0 : i32
    %c0_i32_1 = arith.constant 0 : i32
    return %c0_i32, %c0_i32_0 : i32, i32
  }
  func.func @transform_2(%arg0: i32) -> (i32, i32) {
    %c0_i32 = arith.constant 0 : i32
    %c0_i32_0 = arith.constant 0 : i32
    %c0_i32_1 = arith.constant 0 : i32
    return %c0_i32, %c0_i32_0 : i32, i32
  }
  func.func @transform_3(%arg0: i32) -> (i32, i32) {
    %c0_i32 = arith.constant 0 : i32
    %c0_i32_0 = arith.constant 0 : i32
    %c0_i32_1 = arith.constant 0 : i32
    return %c0_i32, %c0_i32_0 : i32, i32
  }
  func.func @transform_4(%arg0: i32) -> (i32, i32) {
    %c0_i32 = arith.constant 0 : i32
    %c0_i32_0 = arith.constant 0 : i32
    %c0_i32_1 = arith.constant 0 : i32
    return %c0_i32, %c0_i32_0 : i32, i32
  }
  func.func @transform_5(%arg0: i32) -> (i32, i32) {
    %c0_i32 = arith.constant 0 : i32
    %c0_i32_0 = arith.constant 0 : i32
    return %c0_i32, %arg0 : i32, i32
  }
}

</mosaic_0001>

<llo_original>
// kernel: example_nn_forward.1
$region0: #{example_nn_forward.1}
  #allocation0 [shape = 'u32[]', space=smem, size = 0x4, offset = 0x4, fixed_abs, tag = 'smem constant byte address 0x4 - core index']
  #allocation1 [shape = 'u32[144,128]{1,0:T(1,128)}', space=vmem, size = 0x12000, scoped, tag = 'internal scratch']
  #allocation2 [shape = 'f32[1,1]{1,0:T(1,128)S(1)}', space=vmem, size = 0x200, scoped, tag = 'scoped memory for example_nn_forward.1']
  %s0 = inlined_call_operand.vmem [shape: bf16[10,200], index: 0, kind: input, shape index: {}]
  %s1 = inlined_call_operand.vmem [shape: bf16[20,10], index: 1, kind: input, shape index: {}]
  %s2 = inlined_call_operand.vmem [shape: f32[20,1], index: 2, kind: input, shape index: {}]
  %s3 = inlined_call_operand.vmem [shape: f32[20,1], index: 3, kind: input, shape index: {}]
  %s4 = inlined_call_operand.<no memory space> [shape: f32[1,1], index: 4, kind: input, shape index: {}]
  %s5 = inlined_call_operand.hbm [shape: f32[1,200], index: 5, kind: output, shape index: {}]
  %s6 = sld [smem:[#allocation0]]
  $region94: #{example_nn_forward.1} parent=0
    _
  %s8 = ssub.s32 1, %s6
  %s9 = scalar_select 0, %s8, %s6
  %v10 = vstv %s4
  %11 = vst [vmem:[#allocation2] sm:$0x1] %v10
  $region1: #{example_nn_forward.1} parent=0
    #allocation3 [shape = 'u8[8192]{0}', space=vmem, size = 0x2000, scoped, tag = 'input window, operand 0']
    #allocation4 [shape = 'u8[1024]{0}', space=vmem, size = 0x400, scoped, tag = 'output window, operand 0']
    #allocation5 [shape = 's32[2]{0}', space=sflag, size = 0x8, scoped, tag = 'scoped memory for example_nn_forward.1']
    %12 = vsyncpa [#allocation5], 0
    %s13 = scalar_lea.sflag [#allocation5], 1
    %14 = vsyncpa %s13, 0
    loop: start=0, step=1, limit=4
    $region2: #{example_nn_forward.1} parent=1 // loop_pre_header
      _
    $region3: #{example_nn_forward.1} parent=1 // loop_header
      %s16 = sphi 0, %s20
      %p17 = scmp.ge.s32.totalorder %s16, 4
      %s26 = sphi 0, %s28
      %s29 = sphi 0, %s26
      %s30 = sphi 0, %s29
      %s46 = sphi 0, %s30
      %s50 = sphi 0, %s50
      %s52 = sphi 0, %s50
      %s53 = sphi 0, %s52
      %s67 = sphi 0, %s53
      %s71 = sphi 0, %s71
      %s73 = sphi 0, %s71
      %s74 = sphi 0, %s73
      %s88 = sphi 0, %s74
      %s92 = sphi 0, %s92
      %s94 = sphi 0, %s92
      %s95 = sphi 0, %s94
      %s109 = sphi 0, %s95
      %s113 = sphi 0, %s113
      %s115 = sphi 0, %s113
      %s116 = sphi 0, %s115
      %s130 = sphi 0, %s116
      %s136 = sphi 0, %s138
      %s139 = sphi 0, %s136
      %s140 = sphi 0, %s139
      %s156 = sphi 0, %s140
    $region4: #{example_nn_forward.1} parent=1 // loop_header_branch
      %19 = sbr.rel (%p17) target = $region8
    $region5: #{example_nn_forward.1} parent=1 // loop_body
      %s21 = ssub.s32 %s16, 1
      %s22 = ssub.s32 %s16, 2
      %s23 = sadd.s32 %s16, 1
      %s24 = ssub.s32 %s16, %s23
      %p25 = scmp.eq.s32.totalorder %s24, 0
      %s27 = sadd.s32 %s26, 1
      %s28 = scalar_select %p25, %s26, %s27
      %p31 = pneg %p25
      %p32 = scmp.eq.s32.totalorder %s16, 1
      %p33 = por %p31, %p32
      %p34 = scmp.ne.s32.totalorder %s26, %s29
      %p35 = scmp.eq.s32.totalorder %s16, 0
      %p36 = por %p34, %p35
      %p37 = scmp.ne.s32.totalorder %s26, %s29
      %p38 = scmp.eq.s32.totalorder %s21, 1
      %p39 = por %p37, %p38
      %p40 = scmp.ne.s32.totalorder %s29, %s30
      %p41 = scmp.eq.s32.totalorder %s21, 0
      %p42 = por %p40, %p41
      %p43 = scmp.ne.s32.totalorder %s29, %s30
      %p44 = scmp.eq.s32.totalorder %s22, 1
      %p45 = por %p43, %p44
      %p47 = scmp.ne.s32.totalorder %s30, %s46
      %p48 = scmp.eq.s32.totalorder %s22, 0
      %p49 = por %p47, %p48
      %s51 = sadd.s32 %s50, 1
      %p54 = scmp.eq.s32.totalorder %s16, 1
      %p55 = scmp.ne.s32.totalorder %s50, %s52
      %p56 = scmp.eq.s32.totalorder %s16, 0
      %p57 = por %p55, %p56
      %p58 = scmp.ne.s32.totalorder %s50, %s52
      %p59 = scmp.eq.s32.totalorder %s21, 1
      %p60 = por %p58, %p59
      %p61 = scmp.ne.s32.totalorder %s52, %s53
      %p62 = scmp.eq.s32.totalorder %s21, 0
      %p63 = por %p61, %p62
      %p64 = scmp.ne.s32.totalorder %s52, %s53
      %p65 = scmp.eq.s32.totalorder %s22, 1
      %p66 = por %p64, %p65
      %p68 = scmp.ne.s32.totalorder %s53, %s67
      %p69 = scmp.eq.s32.totalorder %s22, 0
      %p70 = por %p68, %p69
      %s72 = sadd.s32 %s71, 1
      %p75 = scmp.eq.s32.totalorder %s16, 1
      %p76 = scmp.ne.s32.totalorder %s71, %s73
      %p77 = scmp.eq.s32.totalorder %s16, 0
      %p78 = por %p76, %p77
      %p79 = scmp.ne.s32.totalorder %s71, %s73
      %p80 = scmp.eq.s32.totalorder %s21, 1
      %p81 = por %p79, %p80
      %p82 = scmp.ne.s32.totalorder %s73, %s74
      %p83 = scmp.eq.s32.totalorder %s21, 0
      %p84 = por %p82, %p83
      %p85 = scmp.ne.s32.totalorder %s73, %s74
      %p86 = scmp.eq.s32.totalorder %s22, 1
      %p87 = por %p85, %p86
      %p89 = scmp.ne.s32.totalorder %s74, %s88
      %p90 = scmp.eq.s32.totalorder %s22, 0
      %p91 = por %p89, %p90
      %s93 = sadd.s32 %s92, 1
      %p96 = scmp.eq.s32.totalorder %s16, 1
      %p97 = scmp.ne.s32.totalorder %s92, %s94
      %p98 = scmp.eq.s32.totalorder %s16, 0
      %p99 = por %p97, %p98
      %p100 = scmp.ne.s32.totalorder %s92, %s94
      %p101 = scmp.eq.s32.totalorder %s21, 1
      %p102 = por %p100, %p101
      %p103 = scmp.ne.s32.totalorder %s94, %s95
      %p104 = scmp.eq.s32.totalorder %s21, 0
      %p105 = por %p103, %p104
      %p106 = scmp.ne.s32.totalorder %s94, %s95
      %p107 = scmp.eq.s32.totalorder %s22, 1
      %p108 = por %p106, %p107
      %p110 = scmp.ne.s32.totalorder %s95, %s109
      %p111 = scmp.eq.s32.totalorder %s22, 0
      %p112 = por %p110, %p111
      %s114 = sadd.s32 %s113, 1
      %p117 = scmp.eq.s32.totalorder %s16, 1
      %p118 = scmp.ne.s32.totalorder %s113, %s115
      %p119 = scmp.eq.s32.totalorder %s16, 0
      %p120 = por %p118, %p119
      %p121 = scmp.ne.s32.totalorder %s113, %s115
      %p122 = scmp.eq.s32.totalorder %s21, 1
      %p123 = por %p121, %p122
      %p124 = scmp.ne.s32.totalorder %s115, %s116
      %p125 = scmp.eq.s32.totalorder %s21, 0
      %p126 = por %p124, %p125
      %p127 = scmp.ne.s32.totalorder %s115, %s116
      %p128 = scmp.eq.s32.totalorder %s22, 1
      %p129 = por %p127, %p128
      %p131 = scmp.ne.s32.totalorder %s116, %s130
      %p132 = scmp.eq.s32.totalorder %s22, 0
      %p133 = por %p131, %p132
      %s134 = ssub.s32 %s16, %s23
      %p135 = scmp.eq.s32.totalorder %s134, 0
      %s137 = sadd.s32 %s136, 1
      %s138 = scalar_select %p135, %s136, %s137
      %p141 = pneg %p135
      %p142 = scmp.eq.s32.totalorder %s16, 1
      %p143 = por %p141, %p142
      %p144 = scmp.ne.s32.totalorder %s136, %s139
      %p145 = scmp.eq.s32.totalorder %s16, 0
      %p146 = por %p144, %p145
      %p147 = scmp.ne.s32.totalorder %s136, %s139
      %p148 = scmp.eq.s32.totalorder %s21, 1
      %p149 = por %p147, %p148
      %p150 = scmp.ne.s32.totalorder %s139, %s140
      %p151 = scmp.eq.s32.totalorder %s21, 0
      %p152 = por %p150, %p151
      %p153 = scmp.ne.s32.totalorder %s139, %s140
      %p154 = scmp.eq.s32.totalorder %s22, 1
      %p155 = por %p153, %p154
      %p157 = scmp.ne.s32.totalorder %s140, %s156
      %p158 = scmp.eq.s32.totalorder %s22, 0
      %p159 = por %p157, %p158
      %p160 = scmp.le.s32.totalorder 1, %s16
      %p161 = scmp.lt.s32.totalorder %s16, 3
      %p162 = pnand %p160, %p161
      %p163 = pneg %p162
      // Predicated region
      $region9: #{example_nn_forward.1} parent=5 // pred_check
        _
      $region10: #{example_nn_forward.1} parent=5 // pred_check_branch
        %165 = sbr.rel (%p162) target = $region12
      $region11: #{example_nn_forward.1} parent=5 // pred_region
        %s166 = ssub.s32 %s16, 1
        // Predicated region
        $region13: #{example_nn_forward.1} parent=11 // pred_check
          %p167 = pneg %p63
        $region14: #{example_nn_forward.1} parent=11 // pred_check_branch
          %169 = sbr.rel (%p167) target = $region16
        $region15: #{example_nn_forward.1} parent=11 // pred_region
          _
        $region16: #{example_nn_forward.1} parent=11 // pred_fallthru
          _
        // Predicated region
        $region17: #{example_nn_forward.1} parent=11 // pred_check
          %p170 = pneg %p84
        $region18: #{example_nn_forward.1} parent=11 // pred_check_branch
          %172 = sbr.rel (%p170) target = $region20
        $region19: #{example_nn_forward.1} parent=11 // pred_region
          _
        $region20: #{example_nn_forward.1} parent=11 // pred_fallthru
          _
        // Predicated region
        $region21: #{example_nn_forward.1} parent=11 // pred_check
          %p173 = pneg %p105
        $region22: #{example_nn_forward.1} parent=11 // pred_check_branch
          %175 = sbr.rel (%p173) target = $region24
        $region23: #{example_nn_forward.1} parent=11 // pred_region
          _
        $region24: #{example_nn_forward.1} parent=11 // pred_fallthru
          _
        // Predicated region
        $region25: #{example_nn_forward.1} parent=11 // pred_check
          %p176 = pneg %p126
        $region26: #{example_nn_forward.1} parent=11 // pred_check_branch
          %178 = sbr.rel (%p176) target = $region28
        $region27: #{example_nn_forward.1} parent=11 // pred_region
          _
        $region28: #{example_nn_forward.1} parent=11 // pred_fallthru
          _
      $region12: #{example_nn_forward.1} parent=5 // pred_fallthru
        _
      %p179 = scmp.lt.s32.totalorder %s16, 2
      // Predicated region
      $region29: #{example_nn_forward.1} parent=5 // pred_check
        %p180 = pneg %p179
      $region30: #{example_nn_forward.1} parent=5 // pred_check_branch
        %182 = sbr.rel (%p180) target = $region32
      $region31: #{example_nn_forward.1} parent=5 // pred_region
        // Predicated region
        $region33: #{example_nn_forward.1} parent=31 // pred_check
          %p183 = pneg %p36
        $region34: #{example_nn_forward.1} parent=31 // pred_check_branch
          %185 = sbr.rel (%p183) target = $region36
        $region35: #{example_nn_forward.1} parent=31 // pred_region
          %s186 = sand.u32 %s26, 1
          %s187 = sand.u32 %s26, 1
          %s188 = smul.addr %s187, 8
          %s189 = scalar_lea.vmem [#allocation3], %s188
          %s190 = smul.addr %s16, 4
          %s191 = scalar_lea.vmem %s0, %s190
          // Predicated region
          $region37: #{example_nn_forward.1} parent=35 // pred_check
            _
          $region38: #{example_nn_forward.1} parent=35 // pred_check_branch
            %193 = sbr.rel (0) target = $region40
          $region39: #{example_nn_forward.1} parent=35 // pred_region
            // Predicated region
            $region41: #{example_nn_forward.1} parent=39 // pred_check
              _
            $region42: #{example_nn_forward.1} parent=39 // pred_check_branch
              %195 = sbr.rel target = $region44
            $region43: #{example_nn_forward.1} parent=39 // pred_region
              // Predicated region
              $region56: #{example_nn_forward.1} parent=43 // pred_check
                _
              $region57: #{example_nn_forward.1} parent=43 // pred_check_branch
                %213 = sbr.rel (0) target = $region59
              $region58: #{example_nn_forward.1} parent=43 // pred_region
                loop: start=0, step=1, limit=1
                $region60: #{example_nn_forward.1} parent=58 // loop_pre_header
                  _
                $region61: #{example_nn_forward.1} parent=58 // loop_header
                  %s215 = sphi 0, %s219
                  %p216 = scmp.ge.s32.totalorder %s215, 1
                  %s220 = sphi %s191, %s191
                  %s221 = sphi %s189, %s189
                $region62: #{example_nn_forward.1} parent=58 // loop_header_branch
                  %218 = sbr.rel (%p216) target = $region66
                $region63: #{example_nn_forward.1} parent=58 // loop_body
                  _
                $region64: #{example_nn_forward.1} parent=58 // loop_footer
                  %s219 = sadd.s32 1, %s215
                $region65: #{example_nn_forward.1} parent=58 // loop_footer_branch
                  %214 = sbr.rel target = $region61
                $region66: #{example_nn_forward.1} parent=58 // loop_exit
                  _
                %s223 = ssub.s32 16, 1
                loop: start=0, step=1, limit=1
                $region67: #{example_nn_forward.1} parent=58 // loop_pre_header
                  _
                $region68: #{example_nn_forward.1} parent=58 // loop_header
                  %s225 = sphi 0, %s229
                  %p226 = scmp.ge.s32.totalorder %s225, 1
                  %s230 = sphi %s191, %s191
                  %s231 = sphi %s189, %s189
                $region69: #{example_nn_forward.1} parent=58 // loop_header_branch
                  %228 = sbr.rel (%p226) target = $region73
                $region70: #{example_nn_forward.1} parent=58 // loop_body
                  %v232 = vld [vmem:[%s230] sm:%s223]
                  %233 = vst [vmem:[%s231] sm:%s223] %v232
                  %v234 = vld [vmem:[%s230 + $0x8] sm:%s223]
                  %235 = vst [vmem:[%s231 + $0x4] sm:%s223] %v234
                $region71: #{example_nn_forward.1} parent=58 // loop_footer
                  %s229 = sadd.s32 1, %s225
                $region72: #{example_nn_forward.1} parent=58 // loop_footer_branch
                  %224 = sbr.rel target = $region68
                $region73: #{example_nn_forward.1} parent=58 // loop_exit
                  _
              $region59: #{example_nn_forward.1} parent=43 // pred_fallthru
                _
            $region44: #{example_nn_forward.1} parent=39 // pred_fallthru
              _
            // Predicated region
            $region45: #{example_nn_forward.1} parent=39 // pred_check
              _
            $region46: #{example_nn_forward.1} parent=39 // pred_check_branch
              %197 = sbr.rel (0) target = $region48
            $region47: #{example_nn_forward.1} parent=39 // pred_region
              %s199 = ssub.s32 16, 1
              loop: start=0, step=1, limit=1
              $region49: #{example_nn_forward.1} parent=47 // loop_pre_header
                _
              $region50: #{example_nn_forward.1} parent=47 // loop_header
                %s201 = sphi 0, %s205
                %p202 = scmp.ge.s32.totalorder %s201, 1
                %s206 = sphi %s191, %s191
                %s207 = sphi %s189, %s189
              $region51: #{example_nn_forward.1} parent=47 // loop_header_branch
                %204 = sbr.rel (%p202) target = $region55
              $region52: #{example_nn_forward.1} parent=47 // loop_body
                %v208 = vld [vmem:[%s206] sm:%s199]
                %209 = vst [vmem:[%s207] sm:%s199] %v208
                %v210 = vld [vmem:[%s206 + $0x8] sm:%s199]
                %211 = vst [vmem:[%s207 + $0x4] sm:%s199] %v210
              $region53: #{example_nn_forward.1} parent=47 // loop_footer
                %s205 = sadd.s32 1, %s201
              $region54: #{example_nn_forward.1} parent=47 // loop_footer_branch
                %200 = sbr.rel target = $region50
              $region55: #{example_nn_forward.1} parent=47 // loop_exit
                _
            $region48: #{example_nn_forward.1} parent=39 // pred_fallthru
              _
          $region40: #{example_nn_forward.1} parent=35 // pred_fallthru
            _
          %236 = vnop
        $region36: #{example_nn_forward.1} parent=31 // pred_fallthru
          _
      $region32: #{example_nn_forward.1} parent=5 // pred_fallthru
        _
      %p237 = scmp.le.s32.totalorder 1, %s16
      %p238 = scmp.lt.s32.totalorder %s16, 3
      %p239 = pnand %p237, %p238
      %p240 = pneg %p239
      // Predicated region
      $region74: #{example_nn_forward.1} parent=5 // pred_check
        _
      $region75: #{example_nn_forward.1} parent=5 // pred_check_branch
        %242 = sbr.rel (%p239) target = $region77
      $region76: #{example_nn_forward.1} parent=5 // pred_region
        %s243 = ssub.s32 %s16, 1
        %s244 = sand.u32 %s29, 1
        %s245 = sand.u32 %s29, 1
        %s246 = smul.addr %s245, 8
        %s247 = scalar_lea.vmem [#allocation3], %s246
        // Predicated region
        $region78: #{example_nn_forward.1} parent=76 // pred_check
          %p248 = pneg %p42
        $region79: #{example_nn_forward.1} parent=76 // pred_check_branch
          %250 = sbr.rel (%p248) target = $region81
        $region80: #{example_nn_forward.1} parent=76 // pred_region
          _
        $region81: #{example_nn_forward.1} parent=76 // pred_fallthru
          _
        %s251 = sand.u32 %s29, 1
        %s252 = sand.u32 %s29, 1
        %s253 = smul.addr %s252, 8
        %s254 = scalar_lea.vmem [#allocation3], %s253
        %p255 = pneg %p42
        %p256 = pneg %p39
        %p257 = pneg %p63
        %p258 = pneg %p60
        %p259 = pneg %p84
        %p260 = pneg %p81
        %p261 = pneg %p105
        %p262 = pneg %p102
        %p263 = pneg %p126
        %p264 = pneg %p123
        %p265 = pneg %p152
        %p266 = pneg %p149
        %s267 = sand.u32 %s139, 1
        %s268 = scalar_lea.sflag [#allocation5], %s267
        %s269 = sand.u32 %s139, 1
        %s270 = scalar_lea.vmem [#allocation4], %s269
        %v272 = vld [vmem:[%s1] sm:$0xf]
        %v273 = vld [vmem:[%s1 + $0x4] sm:$0xf]
        %v274 = vld [vmem:[%s1 + $0x8] sm:$0x3]
        %v275 = vld [vmem:[%s247] sm:$0xf]
        %v276 = vld [vmem:[%s247 + $0x4] sm:$0x1]
        %v277 = vld [vmem:[%s2] sm:$0xff]
        %v278 = vld [vmem:[%s2 + $0x8] sm:$0xff]
        %v279 = vld [vmem:[%s2 + $0x10] sm:$0xf]
        %281 = vset.pattern.permute.xlu0 0
        %282 = vperm.xlu0 %281, %v277
        %v283 = vpop.permute.xlu0 %282
        %286 = vset.pattern.permute.xlu0 0
        %287 = vperm.xlu0 %286, %v278
        %v288 = vpop.permute.xlu0 %287
        %291 = vset.pattern.permute.xlu0 0
        %292 = vperm.xlu0 %291, %v279
        %v293 = vpop.permute.xlu0 %292
        %v298 = vunpack.c.l.b16 %v272
        %v299 = vunpack.c.l.b16 %v273
        %v300 = vunpack.c.l.b16 %v274
        %v301 = vpack.c.b16 %v299, %v298
        %v302 = vpack.c.b16 %v300, %v300
        %v305 = vunpack.c.l.b16 %v275
        %v306 = vunpack.c.l.b16 %v276
        %v307 = vpack.c.b16 %v306, %v305
        %vm308 = vcmask 80896
        %v310 = vsel %vm308, %v301, 0
        %v313 = vsel %vm308, %v302, 0
        %vm315 = vcmask 1044480
        %v317 = vsel %vm315, %v307, 0
        %319 = vmatprep.subr.bf16.mxu0 0
        %320 = vmatpush1.bf16.msra.mxu0 0
        %321 = vmatprep.subr.bf16.mxu0 0
        %322 = vmatpush1.bf16.msra.mxu0 0
        %323 = vmatprep.subr.bf16.mxu0 0
        %324 = vmatpush1.bf16.msra.mxu0 0
        %325 = vmatprep.subr.bf16.mxu0 0
        %326 = vmatpush1.bf16.msra.mxu0 0
        %327 = vmatprep.subr.bf16.mxu0 0
        %328 = vmatpush1.bf16.msra.mxu0 0
        %329 = vmatprep.subr.bf16.mxu0 0
        %330 = vmatpush1.bf16.msra.mxu0 0
        %331 = vmatprep.subr.bf16.mxu0 0
        %332 = vmatpush1.bf16.msra.mxu0 0
        %333 = vmatprep.subr.bf16.mxu0 0
        %334 = vmatpush1.bf16.msra.mxu0 %v317
        %335 = vmatprep.subr.bf16.mxu0 0
        %336 = vmatpush2.bf16.msra.mxu0 0
        %337 = vmatprep.subr.bf16.mxu0 0
        %338 = vmatpush2.bf16.msra.mxu0 0
        %339 = vmatprep.subr.bf16.mxu0 0
        %340 = vmatpush2.bf16.msra.mxu0 0
        %341 = vmatprep.subr.bf16.mxu0 0
        %342 = vmatpush2.bf16.msra.mxu0 0
        %343 = vmatprep.subr.bf16.mxu0 0
        %344 = vmatpush2.bf16.msra.mxu0 0
        %345 = vmatprep.subr.bf16.mxu0 0
        %346 = vmatpush2.bf16.msra.mxu0 0
        %347 = vmatprep.subr.bf16.mxu0 0
        %348 = vmatpush2.bf16.msra.mxu0 0
        %349 = vmatprep.subr.bf16.mxu0 0
        %350 = vmatpush2.bf16.msra.mxu0 0
        %351 = vmatprep.mubr.bf16.mxu0 0
        %352 = vmatmul.mubr.bf16.gmra.mxu0 %v310
        %v353 = vpop.f32.mrf.mxu0
        %v354 = vadd.f32 %v283, %v353
        %v355 = vpop.f32.mrf.mxu0
        %v356 = vpop.f32.mrf.mxu0
        %v357 = vadd.f32 %v288, %v356
        %v358 = vpop.f32.mrf.mxu0
        %359 = vmatprep.mubr.bf16.mxu0 0
        %360 = vmatmul.mubr.bf16.gmra.mxu0 %v313
        %v361 = vpop.f32.mrf.mxu0
        %v362 = vadd.f32 %v293, %v361
        %v363 = vpop.f32.mrf.mxu0
        %v364 = vpop.f32.mrf.mxu0
        %v365 = vpop.f32.mrf.mxu0
        %366 = vdwg.mxu0
        %v367 = vsub.f32 0.0, %v354
        %v368 = vsub.f32 0.0, %v357
        %v369 = vsub.f32 0.0, %v362
        %v370 = vmul.f32 %v367, 1.442695
        %v371 = vpow.pop %v370
        %v372 = vmul.f32 %v368, 1.442695
        %v373 = vpow.pop %v372
        %v374 = vmul.f32 %v369, 1.442695
        %v375 = vpow.pop %v374
        %v376 = vadd.f32 %v371, 1.0
        %v377 = vadd.f32 %v373, 1.0
        %v378 = vadd.f32 %v375, 1.0
        %v379 = vrcp.pop %v376
        %v380 = vrcp.pop %v377
        %v381 = vrcp.pop %v378
        %v382 = vld [vmem:[%s3] sm:$0xff]
        %v383 = vld [vmem:[%s3 + $0x8] sm:$0xff]
        %v384 = vld [vmem:[%s3 + $0x10] sm:$0xf]
        %386 = vset.pattern.permute.xlu0 0
        %387 = vperm.xlu0 %386, %v382
        %v388 = vpop.permute.xlu0 %387
        %391 = vset.pattern.permute.xlu0 0
        %392 = vperm.xlu0 %391, %v383
        %v393 = vpop.permute.xlu0 %392
        %396 = vset.pattern.permute.xlu0 0
        %397 = vperm.xlu0 %396, %v384
        %v398 = vpop.permute.xlu0 %397
        %v400 = vmul.f32 %v379, %v388
        %v401 = vmul.f32 %v380, %v393
        %v402 = vmul.f32 %v381, %v398
        %v403 = vadd.f32 %v400, %v401
        %vm404 = vcmask 1043456
        %v405 = vsel %vm404, %v402, 0.0
        %v406 = vadd.f32 %v403, %v405
        %v407 = vrot.slane %v406, 4
        %v408 = vadd.f32 %v406, %v407
        %v409 = vrot.slane %v408, 2
        %v410 = vadd.f32 %v408, %v409
        %v411 = vrot.slane %v410, 1
        %v412 = vadd.f32 %v410, %v411
        %v413 = vld [vmem:[#allocation2] sm:$0x1]
        %415 = vset.pattern.permute.xlu0 0
        %416 = vperm.xlu0 %415, %v413
        %v417 = vpop.permute.xlu0 %416
        %v419 = vlaneseq
        %v420 = vshrl.u32 %v419, 7
        %v421 = vsub.s32 0, %v420
        %v422 = vrot.slane %v417, %v421
        %v423 = vadd.f32 %v412, %v422
        %v424 = vmax.f32 %v423, 0.0
        %425 = vst [vmem:[%s270] sm:$0x1] %v424
        %s426 = sand.u32 %s139, 1
        %s427 = scalar_lea.sflag [#allocation5], %s426
        %s428 = sand.u32 %s139, 1
        %s429 = scalar_lea.vmem [#allocation4], %s428
        // Predicated region
        $region82: #{example_nn_forward.1} parent=76 // pred_check
          %p430 = pneg %p149
        $region83: #{example_nn_forward.1} parent=76 // pred_check_branch
          %432 = sbr.rel (%p430) target = $region85
        $region84: #{example_nn_forward.1} parent=76 // pred_region
          %s434 = ssub.s32 16, 16
          %435 = vsyncadd %s427, %s434
          %s436 = smul.addr %s21, 16
          %s437 = scalar_lea.hbm %s5, %s436
          %s439 = sshll.u32 %s429, 4
          %s440 = int_to_ptr.vmem [resolvable:$true] %s439
          %442 = dma.vmem_to_hbm [thread:$0]  %s440, 16, %s437, %s427
        $region85: #{example_nn_forward.1} parent=76 // pred_fallthru
          _
      $region77: #{example_nn_forward.1} parent=5 // pred_fallthru
        _
      %p443 = scmp.le.s32.totalorder 2, %s16
      // Predicated region
      $region86: #{example_nn_forward.1} parent=5 // pred_check
        %p444 = pneg %p443
      $region87: #{example_nn_forward.1} parent=5 // pred_check_branch
        %446 = sbr.rel (%p444) target = $region89
      $region88: #{example_nn_forward.1} parent=5 // pred_region
        %s447 = ssub.s32 %s16, 2
        // Predicated region
        $region90: #{example_nn_forward.1} parent=88 // pred_check
          %p448 = pneg %p155
        $region91: #{example_nn_forward.1} parent=88 // pred_check_branch
          %450 = sbr.rel (%p448) target = $region93
        $region92: #{example_nn_forward.1} parent=88 // pred_region
          %s451 = sand.u32 %s140, 1
          %s452 = scalar_lea.sflag [#allocation5], %s451
          %s453 = sand.u32 %s140, 1
          %s454 = scalar_lea.vmem [#allocation4], %s453
          %455 = dma.done %s452, 16
        $region93: #{example_nn_forward.1} parent=88 // pred_fallthru
          _
      $region89: #{example_nn_forward.1} parent=5 // pred_fallthru
        _
    $region6: #{example_nn_forward.1} parent=1 // loop_footer
      %s20 = sadd.s32 1, %s16
    $region7: #{example_nn_forward.1} parent=1 // loop_footer_branch
      %15 = sbr.rel target = $region3
    $region8: #{example_nn_forward.1} parent=1 // loop_exit
      _
    %456 = vsyncpa [#allocation5], 1
    %s457 = scalar_lea.sflag [#allocation5], 1
    %458 = vsyncpa %s457, 1

</llo_original>
